<compile_context>
chip_gen: v5e
topology: v5e:2x2
jax: 0.10.0
libtpu: 0.0.40
codegen_flags: <defaults>
</compile_context>

<pallas_src>
import jax
import jax.numpy as jnp
from jax.experimental import pallas as pl
from jax.experimental.pallas import tpu as pltpu

STATE_SIZE = 4
ACTION_SIZE = 2
H = 40

BIAS_C = H          # bias column inside the slab
SLAB_ROWS = 88      # 82 rounded up to a sublane multiple of 8
SLAB_COLS = 128     # one full lane tile
TB = 128            # batch-tile (lane) width


def actor_kernel(slab_ref, xt_ref, out_ref):
    # Transposed layout: features on sublanes, batch on lanes.
    xt = xt_ref[...]                                                # (4, TB)

    w1 = slab_ref[0:H, 0:STATE_SIZE]                                # (40, 4)
    b1 = slab_ref[0:H, BIAS_C:BIAS_C + 1]                           # (40, 1)
    w2 = slab_ref[H:2 * H, 0:H]                                     # (40, 40)
    b2 = slab_ref[H:2 * H, BIAS_C:BIAS_C + 1]                       # (40, 1)
    w3 = slab_ref[2 * H:2 * H + ACTION_SIZE, 0:H]                   # (2, 40)
    b3 = slab_ref[2 * H:2 * H + ACTION_SIZE, BIAS_C:BIAS_C + 1]     # (2, 1)

    # fc1 (K = 4): four broadcast multiply-adds on the VPU.
    h1 = b1 + w1[:, 0:1] * xt[0:1, :]
    for k in range(1, STATE_SIZE):                                  # static unroll
        h1 = h1 + w1[:, k:k + 1] * xt[k:k + 1, :]
    h1 = jnp.maximum(h1, 0.0)                                       # (40, TB)

    # fc2 + ReLU on the MXU (f32 accumulate).
    h2 = jnp.dot(w2, h1, preferred_element_type=jnp.float32) + b2
    h2 = jnp.maximum(h2, 0.0)                                       # (40, TB)

    # fc3.
    logits = jnp.dot(w3, h2, preferred_element_type=jnp.float32) + b3   # (2, TB)

    # 2-class log_softmax, closed form: no masked cross-lane max/sum.
    s0 = logits[0:1, :]
    s1 = logits[1:2, :]
    m = jnp.maximum(s0, s1)
    lse = m + jnp.log(1.0 + jnp.exp(-jnp.abs(s0 - s1)))
    out_ref[...] = logits - lse                                     # lane-dense store


@jax.jit
def actor_net_forward(x, slab):
    """x: (B, STATE_SIZE) f32, slab: packed params. Returns (B, ACTION_SIZE) log-probs."""
    B = x.shape[0]
    nb = pl.cdiv(B, TB)
    bp = nb * TB
    xt = x.astype(jnp.float32).T                                    # (4, B)
    if bp != B:
        xt = jnp.pad(xt, ((0, 0), (0, bp - B)))                     # pad batch lanes

    out_t = pl.pallas_call(
        actor_kernel,
        out_shape=jax.ShapeDtypeStruct((ACTION_SIZE, bp), jnp.float32),
        grid_spec=pltpu.PrefetchScalarGridSpec(
            num_scalar_prefetch=0,
            grid=(nb,),
            in_specs=[
                # Parameter slab: constant block index -> fetched once, resident.
                pl.BlockSpec((SLAB_ROWS, SLAB_COLS), lambda i: (0, 0)),
                # Batch tile of x^T.
                pl.BlockSpec((STATE_SIZE, TB), lambda i: (0, i)),
            ],
            out_specs=pl.BlockSpec((ACTION_SIZE, TB), lambda i: (0, i)),
        ),
        compiler_params=pltpu.CompilerParams(
            dimension_semantics=("parallel",),
        ),
    )(slab, xt)
    return out_t[:, :B].T


def init_params(key):
    """PyTorch-style (uniform +/- 1/sqrt(fan_in)) init; weights in (out, in) layout."""
    ks = jax.random.split(key, 6)

    def lin(kw, kb, fan_in, fan_out):
        bound = 1.0 / jnp.sqrt(jnp.float32(fan_in))
        w = jax.random.uniform(kw, (fan_out, fan_in), jnp.float32, -bound, bound)
        b = jax.random.uniform(kb, (fan_out,), jnp.float32, -bound, bound)
        return w, b

    w1, b1 = lin(ks[0], ks[1], STATE_SIZE, H)
    w2, b2 = lin(ks[2], ks[3], H, H)
    w3, b3 = lin(ks[4], ks[5], H, ACTION_SIZE)
    return (w1, b1, w2, b2, w3, b3)


def pack_params(params):
    """One-time packing of all layer params into a single f32 slab."""
    w1, b1, w2, b2, w3, b3 = params
    slab = jnp.zeros((SLAB_ROWS, SLAB_COLS), jnp.float32)
    slab = slab.at[0:H, 0:STATE_SIZE].set(w1)
    slab = slab.at[0:H, BIAS_C].set(b1)
    slab = slab.at[H:2 * H, 0:H].set(w2)
    slab = slab.at[H:2 * H, BIAS_C].set(b2)
    slab = slab.at[2 * H:2 * H + ACTION_SIZE, 0:H].set(w3)
    slab = slab.at[2 * H:2 * H + ACTION_SIZE, BIAS_C].set(b3)
    return slab


def reference_forward(x, params):
    w1, b1, w2, b2, w3, b3 = params
    h1 = jnp.maximum(x @ w1.T + b1, 0.0)
    h2 = jnp.maximum(h1 @ w2.T + b2, 0.0)
    logits = h2 @ w3.T + b3
    return jax.nn.log_softmax(logits, axis=-1)


if __name__ == "__main__":
    key = jax.random.PRNGKey(0)
    k_params, k_x = jax.random.split(key)

    params = init_params(k_params)
    slab = pack_params(params)        # packed once, amortized over all forward calls

    B = 256                           # rollout-sized batch -> grid=(2,) lane-dense tiles
    x = jax.random.normal(k_x, (B, STATE_SIZE), jnp.float32)

    out = actor_net_forward(x, slab)
    out = jax.block_until_ready(out)

    ref = reference_forward(x, params)
    assert out.shape == (B, ACTION_SIZE)
    assert jnp.allclose(out, ref, atol=5e-5, rtol=5e-5), float(jnp.max(jnp.abs(out - ref)))

    print("KERNEL_OK")
</pallas_src>

<mosaic_0001>
module attributes {stable_mosaic.version = 11 : i64} {
  func.func @actor_kernel(%arg0: i32, %arg1: memref<88x128xf32, #tpu.memory_space<vmem>>, %arg2: memref<4x128xf32, #tpu.memory_space<vmem>>, %arg3: memref<2x128xf32, #tpu.memory_space<vmem>>) attributes {dimension_semantics = [#tpu.dimension_semantics<parallel>], iteration_bounds = array<i64: 2>, scalar_prefetch = 0 : i64, scratch_operands = 0 : i64, tpu.core_type = #tpu.core_type<tc>, window_params = [{pipeline_mode = #tpu.pipeline_mode<synchronous>, transform_indices = @transform_0, window_bounds = array<i64: 88, 128>}, {transform_indices = @transform_1, window_bounds = array<i64: 4, 128>}, {transform_indices = @transform_2, window_bounds = array<i64: 2, 128>}]} {
    %c0 = arith.constant 0 : index
    %c0_0 = arith.constant 0 : index
    %0 = vector.load %arg2[%c0, %c0_0] : memref<4x128xf32, #tpu.memory_space<vmem>>, vector<4x128xf32>
    %c0_1 = arith.constant 0 : index
    %c0_2 = arith.constant 0 : index
    %1 = vector.load %arg1[%c0_1, %c0_2] : memref<88x128xf32, #tpu.memory_space<vmem>>, vector<40x4xf32>
    %c0_3 = arith.constant 0 : index
    %c40 = arith.constant 40 : index
    %2 = vector.load %arg1[%c0_3, %c40] : memref<88x128xf32, #tpu.memory_space<vmem>>, vector<40x1xf32>
    %c40_4 = arith.constant 40 : index
    %c0_5 = arith.constant 0 : index
    %3 = vector.load %arg1[%c40_4, %c0_5] : memref<88x128xf32, #tpu.memory_space<vmem>>, vector<40x40xf32>
    %c40_6 = arith.constant 40 : index
    %c40_7 = arith.constant 40 : index
    %4 = vector.load %arg1[%c40_6, %c40_7] : memref<88x128xf32, #tpu.memory_space<vmem>>, vector<40x1xf32>
    %c80 = arith.constant 80 : index
    %c0_8 = arith.constant 0 : index
    %5 = vector.load %arg1[%c80, %c0_8] : memref<88x128xf32, #tpu.memory_space<vmem>>, vector<2x40xf32>
    %c80_9 = arith.constant 80 : index
    %c40_10 = arith.constant 40 : index
    %6 = vector.load %arg1[%c80_9, %c40_10] : memref<88x128xf32, #tpu.memory_space<vmem>>, vector<2x1xf32>
    %7 = vector.extract_strided_slice %1 {offsets = [0, 0], sizes = [40, 1], strides = [1, 1]} : vector<40x4xf32> to vector<40x1xf32>
    %8 = vector.extract_strided_slice %0 {offsets = [0, 0], sizes = [1, 128], strides = [1, 1]} : vector<4x128xf32> to vector<1x128xf32>
    %9 = vector.broadcast %7 : vector<40x1xf32> to vector<40x128xf32>
    %10 = vector.broadcast %8 : vector<1x128xf32> to vector<40x128xf32>
    %11 = arith.mulf %9, %10 : vector<40x128xf32>
    %12 = vector.broadcast %2 : vector<40x1xf32> to vector<40x128xf32>
    %13 = arith.addf %12, %11 : vector<40x128xf32>
    %14 = vector.extract_strided_slice %1 {offsets = [0, 1], sizes = [40, 1], strides = [1, 1]} : vector<40x4xf32> to vector<40x1xf32>
    %15 = vector.extract_strided_slice %0 {offsets = [1, 0], sizes = [1, 128], strides = [1, 1]} : vector<4x128xf32> to vector<1x128xf32>
    %16 = vector.broadcast %14 : vector<40x1xf32> to vector<40x128xf32>
    %17 = vector.broadcast %15 : vector<1x128xf32> to vector<40x128xf32>
    %18 = arith.mulf %16, %17 : vector<40x128xf32>
    %19 = arith.addf %13, %18 : vector<40x128xf32>
    %20 = vector.extract_strided_slice %1 {offsets = [0, 2], sizes = [40, 1], strides = [1, 1]} : vector<40x4xf32> to vector<40x1xf32>
    %21 = vector.extract_strided_slice %0 {offsets = [2, 0], sizes = [1, 128], strides = [1, 1]} : vector<4x128xf32> to vector<1x128xf32>
    %22 = vector.broadcast %20 : vector<40x1xf32> to vector<40x128xf32>
    %23 = vector.broadcast %21 : vector<1x128xf32> to vector<40x128xf32>
    %24 = arith.mulf %22, %23 : vector<40x128xf32>
    %25 = arith.addf %19, %24 : vector<40x128xf32>
    %26 = vector.extract_strided_slice %1 {offsets = [0, 3], sizes = [40, 1], strides = [1, 1]} : vector<40x4xf32> to vector<40x1xf32>
    %27 = vector.extract_strided_slice %0 {offsets = [3, 0], sizes = [1, 128], strides = [1, 1]} : vector<4x128xf32> to vector<1x128xf32>
    %28 = vector.broadcast %26 : vector<40x1xf32> to vector<40x128xf32>
    %29 = vector.broadcast %27 : vector<1x128xf32> to vector<40x128xf32>
    %30 = arith.mulf %28, %29 : vector<40x128xf32>
    %31 = arith.addf %25, %30 : vector<40x128xf32>
    %cst = arith.constant 0.000000e+00 : f32
    %32 = vector.broadcast %cst : f32 to vector<40x128xf32>
    %33 = arith.maximumf %31, %32 : vector<40x128xf32>
    %cst_11 = arith.constant dense<0.000000e+00> : vector<40x128xf32>
    %34 = tpu.matmul %3, %33, %cst_11 {dimension_numbers = #tpu.dot_dimension_numbers<[1], [0], [0], [1], [0, 0, 1, 1], [], []>} : vector<40x40xf32>, vector<40x128xf32>, vector<40x128xf32> -> vector<40x128xf32>
    %35 = vector.broadcast %4 : vector<40x1xf32> to vector<40x128xf32>
    %36 = arith.addf %34, %35 : vector<40x128xf32>
    %cst_12 = arith.constant 0.000000e+00 : f32
    %37 = vector.broadcast %cst_12 : f32 to vector<40x128xf32>
    %38 = arith.maximumf %36, %37 : vector<40x128xf32>
    %cst_13 = arith.constant dense<0.000000e+00> : vector<2x128xf32>
    %39 = tpu.matmul %5, %38, %cst_13 {dimension_numbers = #tpu.dot_dimension_numbers<[1], [0], [0], [1], [0, 0, 1, 1], [], []>} : vector<2x40xf32>, vector<40x128xf32>, vector<2x128xf32> -> vector<2x128xf32>
    %40 = vector.broadcast %6 : vector<2x1xf32> to vector<2x128xf32>
    %41 = arith.addf %39, %40 : vector<2x128xf32>
    %42 = vector.extract_strided_slice %41 {offsets = [0, 0], sizes = [1, 128], strides = [1, 1]} : vector<2x128xf32> to vector<1x128xf32>
    %43 = vector.extract_strided_slice %41 {offsets = [1, 0], sizes = [1, 128], strides = [1, 1]} : vector<2x128xf32> to vector<1x128xf32>
    %44 = arith.maximumf %42, %43 : vector<1x128xf32>
    %45 = arith.subf %42, %43 : vector<1x128xf32>
    %46 = math.absf %45 : vector<1x128xf32>
    %cst_14 = arith.constant 0.000000e+00 : f32
    %47 = vector.broadcast %cst_14 : f32 to vector<1x128xf32>
    %48 = arith.subf %47, %46 : vector<1x128xf32>
    %49 = math.exp %48 : vector<1x128xf32>
    %cst_15 = arith.constant 1.000000e+00 : f32
    %50 = vector.broadcast %cst_15 : f32 to vector<1x128xf32>
    %51 = arith.addf %50, %49 : vector<1x128xf32>
    %52 = math.log %51 : vector<1x128xf32>
    %53 = arith.addf %44, %52 : vector<1x128xf32>
    %54 = vector.broadcast %53 : vector<1x128xf32> to vector<2x128xf32>
    %55 = arith.subf %41, %54 : vector<2x128xf32>
    %c0_16 = arith.constant 0 : index
    %c0_17 = arith.constant 0 : index
    %56 = vector.load %arg3[%c0_16, %c0_17] : memref<2x128xf32, #tpu.memory_space<vmem>>, vector<2x128xf32>
    tpu.vector_store %arg3[%c0_16, %c0_17], %55 {strides = array<i32>} : memref<2x128xf32, #tpu.memory_space<vmem>>, vector<2x128xf32>,
    return
  }
  func.func @transform_0(%arg0: i32) -> (i32, i32) {
    %c0_i32 = arith.constant 0 : i32
    %c0_i32_0 = arith.constant 0 : i32
    %c0_i32_1 = arith.constant 0 : i32
    return %c0_i32, %c0_i32_0 : i32, i32
  }
  func.func @transform_1(%arg0: i32) -> (i32, i32) {
    %c0_i32 = arith.constant 0 : i32
    %c0_i32_0 = arith.constant 0 : i32
    return %c0_i32, %arg0 : i32, i32
  }
  func.func @transform_2(%arg0: i32) -> (i32, i32) {
    %c0_i32 = arith.constant 0 : i32
    %c0_i32_0 = arith.constant 0 : i32
    return %c0_i32, %arg0 : i32, i32
  }
}

</mosaic_0001>

<llo_original>
// kernel: actor_net_forward.1
$region0: #{actor_net_forward.1}
  #allocation0 [shape = 'u32[]', space=smem, size = 0x4, offset = 0x4, fixed_abs, tag = 'smem constant byte address 0x4 - core index']
  #allocation1 [shape = 'u32[72,128]{1,0:T(1,128)}', space=vmem, size = 0x9000, scoped, tag = 'internal scratch']
  %s0 = inlined_call_operand.hbm [shape: f32[88,128], index: 0, kind: input, shape index: {}]
  %s1 = inlined_call_operand.hbm [shape: f32[4,256], index: 1, kind: input, shape index: {}]
  %s2 = inlined_call_operand.hbm [shape: f32[2,256], index: 2, kind: output, shape index: {}]
  %s3 = sld [smem:[#allocation0]]
  $region49: #{actor_net_forward.1} parent=0
    _
  %s5 = ssub.s32 1, %s3
  %s6 = scalar_select 0, %s5, %s3
  $region1: #{actor_net_forward.1} parent=0
    #allocation2 [shape = 'u8[45056]{0}', space=vmem, size = 0xb000, scoped, tag = 'input window, operand 0, single buffered']
    #allocation3 [shape = 's32[2]{0}', space=sflag, size = 0x8, scoped, tag = 'scoped memory for actor_net_forward.1']
    #allocation4 [shape = 's32[2]{0}', space=sflag, size = 0x8, scoped, tag = 'scoped memory for actor_net_forward.1']
    #allocation5 [shape = 'u8[4096]{0}', space=vmem, size = 0x1000, scoped, tag = 'input window, operand 1']
    #allocation6 [shape = 's32[2]{0}', space=sflag, size = 0x8, scoped, tag = 'scoped memory for actor_net_forward.1']
    #allocation7 [shape = 'u8[2048]{0}', space=vmem, size = 0x800, scoped, tag = 'output window, operand 0']
    %7 = vsyncpa [#allocation3], 0
    %8 = vsyncpa [#allocation6], 0
    %s9 = scalar_lea.sflag [#allocation6], 1
    %10 = vsyncpa %s9, 0
    %11 = vsyncpa [#allocation4], 0
    %s12 = scalar_lea.sflag [#allocation4], 1
    %13 = vsyncpa %s12, 0
    loop: start=0, step=1, limit=4
    $region2: #{actor_net_forward.1} parent=1 // loop_pre_header
      _
    $region3: #{actor_net_forward.1} parent=1 // loop_header
      %s15 = sphi 0, %s19
      %p16 = scmp.ge.s32.totalorder %s15, 4
      %s23 = sphi 0, %s23
      %s25 = sphi 0, %s23
      %s26 = sphi 0, %s25
      %s40 = sphi 0, %s26
      %s46 = sphi 0, %s48
      %s49 = sphi 0, %s46
      %s50 = sphi 0, %s49
      %s66 = sphi 0, %s50
      %s72 = sphi 0, %s74
      %s75 = sphi 0, %s72
      %s76 = sphi 0, %s75
      %s92 = sphi 0, %s76
    $region4: #{actor_net_forward.1} parent=1 // loop_header_branch
      %18 = sbr.rel (%p16) target = $region8
    $region5: #{actor_net_forward.1} parent=1 // loop_body
      %s20 = ssub.s32 %s15, 1
      %s21 = ssub.s32 %s15, 2
      %s22 = sadd.s32 %s15, 1
      %s24 = sadd.s32 %s23, 1
      %p27 = scmp.eq.s32.totalorder %s15, 1
      %p28 = scmp.ne.s32.totalorder %s23, %s25
      %p29 = scmp.eq.s32.totalorder %s15, 0
      %p30 = por %p28, %p29
      %p31 = scmp.ne.s32.totalorder %s23, %s25
      %p32 = scmp.eq.s32.totalorder %s20, 1
      %p33 = por %p31, %p32
      %p34 = scmp.ne.s32.totalorder %s25, %s26
      %p35 = scmp.eq.s32.totalorder %s20, 0
      %p36 = por %p34, %p35
      %p37 = scmp.ne.s32.totalorder %s25, %s26
      %p38 = scmp.eq.s32.totalorder %s21, 1
      %p39 = por %p37, %p38
      %p41 = scmp.ne.s32.totalorder %s26, %s40
      %p42 = scmp.eq.s32.totalorder %s21, 0
      %p43 = por %p41, %p42
      %s44 = ssub.s32 %s15, %s22
      %p45 = scmp.eq.s32.totalorder %s44, 0
      %s47 = sadd.s32 %s46, 1
      %s48 = scalar_select %p45, %s46, %s47
      %p51 = pneg %p45
      %p52 = scmp.eq.s32.totalorder %s15, 1
      %p53 = por %p51, %p52
      %p54 = scmp.ne.s32.totalorder %s46, %s49
      %p55 = scmp.eq.s32.totalorder %s15, 0
      %p56 = por %p54, %p55
      %p57 = scmp.ne.s32.totalorder %s46, %s49
      %p58 = scmp.eq.s32.totalorder %s20, 1
      %p59 = por %p57, %p58
      %p60 = scmp.ne.s32.totalorder %s49, %s50
      %p61 = scmp.eq.s32.totalorder %s20, 0
      %p62 = por %p60, %p61
      %p63 = scmp.ne.s32.totalorder %s49, %s50
      %p64 = scmp.eq.s32.totalorder %s21, 1
      %p65 = por %p63, %p64
      %p67 = scmp.ne.s32.totalorder %s50, %s66
      %p68 = scmp.eq.s32.totalorder %s21, 0
      %p69 = por %p67, %p68
      %s70 = ssub.s32 %s15, %s22
      %p71 = scmp.eq.s32.totalorder %s70, 0
      %s73 = sadd.s32 %s72, 1
      %s74 = scalar_select %p71, %s72, %s73
      %p77 = pneg %p71
      %p78 = scmp.eq.s32.totalorder %s15, 1
      %p79 = por %p77, %p78
      %p80 = scmp.ne.s32.totalorder %s72, %s75
      %p81 = scmp.eq.s32.totalorder %s15, 0
      %p82 = por %p80, %p81
      %p83 = scmp.ne.s32.totalorder %s72, %s75
      %p84 = scmp.eq.s32.totalorder %s20, 1
      %p85 = por %p83, %p84
      %p86 = scmp.ne.s32.totalorder %s75, %s76
      %p87 = scmp.eq.s32.totalorder %s20, 0
      %p88 = por %p86, %p87
      %p89 = scmp.ne.s32.totalorder %s75, %s76
      %p90 = scmp.eq.s32.totalorder %s21, 1
      %p91 = por %p89, %p90
      %p93 = scmp.ne.s32.totalorder %s76, %s92
      %p94 = scmp.eq.s32.totalorder %s21, 0
      %p95 = por %p93, %p94
      %p96 = scmp.le.s32.totalorder 1, %s15
      %p97 = scmp.lt.s32.totalorder %s15, 3
      %p98 = pnand %p96, %p97
      %p99 = pneg %p98
      // Predicated region
      $region9: #{actor_net_forward.1} parent=5 // pred_check
        _
      $region10: #{actor_net_forward.1} parent=5 // pred_check_branch
        %101 = sbr.rel (%p98) target = $region12
      $region11: #{actor_net_forward.1} parent=5 // pred_region
        %s102 = ssub.s32 %s15, 1
        // Predicated region
        $region13: #{actor_net_forward.1} parent=11 // pred_check
          %p103 = pneg %p36
        $region14: #{actor_net_forward.1} parent=11 // pred_check_branch
          %105 = sbr.rel (%p103) target = $region16
        $region15: #{actor_net_forward.1} parent=11 // pred_region
          %107 = vsyncadd [#allocation3], 0
          %s108 = sshll.u32 %s0, 4
          %s109 = int_to_ptr.hbm [resolvable:$true] %s108
          %s110 = sshll.u32 [#allocation2], 4
          %s111 = int_to_ptr.vmem [resolvable:$true] %s110
          %116 = dma.hbm_to_vmem [thread:$0]  %s109, 1408, %s111, [#allocation3], 128, 128, 8
        $region16: #{actor_net_forward.1} parent=11 // pred_fallthru
          _
      $region12: #{actor_net_forward.1} parent=5 // pred_fallthru
        _
      %p117 = scmp.lt.s32.totalorder %s15, 2
      // Predicated region
      $region17: #{actor_net_forward.1} parent=5 // pred_check
        %p118 = pneg %p117
      $region18: #{actor_net_forward.1} parent=5 // pred_check_branch
        %120 = sbr.rel (%p118) target = $region20
      $region19: #{actor_net_forward.1} parent=5 // pred_region
        // Predicated region
        $region21: #{actor_net_forward.1} parent=19 // pred_check
          %p121 = pneg %p56
        $region22: #{actor_net_forward.1} parent=19 // pred_check_branch
          %123 = sbr.rel (%p121) target = $region24
        $region23: #{actor_net_forward.1} parent=19 // pred_region
          %s124 = sand.u32 %s46, 1
          %s125 = scalar_lea.sflag [#allocation6], %s124
          %s126 = sand.u32 %s46, 1
          %s127 = smul.addr %s126, 4
          %s128 = scalar_lea.vmem [#allocation5], %s127
          %130 = vsyncadd %s125, 0
          %s131 = smul.addr %s15, 4
          %s132 = scalar_lea.hbm %s1, %s131
          %s134 = sshll.u32 %s132, 4
          %s135 = int_to_ptr.hbm [resolvable:$true] %s134
          %s136 = sshll.u32 %s128, 4
          %s137 = int_to_ptr.vmem [resolvable:$true] %s136
          %139 = dma.hbm_to_vmem [thread:$0]  %s135, 64, %s137, %s125
        $region24: #{actor_net_forward.1} parent=19 // pred_fallthru
          _
      $region20: #{actor_net_forward.1} parent=5 // pred_fallthru
        _
      %p140 = scmp.le.s32.totalorder 1, %s15
      %p141 = scmp.lt.s32.totalorder %s15, 3
      %p142 = pnand %p140, %p141
      %p143 = pneg %p142
      // Predicated region
      $region25: #{actor_net_forward.1} parent=5 // pred_check
        _
      $region26: #{actor_net_forward.1} parent=5 // pred_check_branch
        %145 = sbr.rel (%p142) target = $region28
      $region27: #{actor_net_forward.1} parent=5 // pred_region
        %s146 = ssub.s32 %s15, 1
        // Predicated region
        $region29: #{actor_net_forward.1} parent=27 // pred_check
          %p147 = pneg %p36
        $region30: #{actor_net_forward.1} parent=27 // pred_check_branch
          %149 = sbr.rel (%p147) target = $region32
        $region31: #{actor_net_forward.1} parent=27 // pred_region
          %151 = dma.done [#allocation3], 1408
        $region32: #{actor_net_forward.1} parent=27 // pred_fallthru
          _
        %s152 = sand.u32 %s49, 1
        %s153 = scalar_lea.sflag [#allocation6], %s152
        %s154 = sand.u32 %s49, 1
        %s155 = smul.addr %s154, 4
        %s156 = scalar_lea.vmem [#allocation5], %s155
        // Predicated region
        $region33: #{actor_net_forward.1} parent=27 // pred_check
          %p157 = pneg %p62
        $region34: #{actor_net_forward.1} parent=27 // pred_check_branch
          %159 = sbr.rel (%p157) target = $region36
        $region35: #{actor_net_forward.1} parent=27 // pred_region
          %161 = dma.done %s153, 64
        $region36: #{actor_net_forward.1} parent=27 // pred_fallthru
          _
        %p162 = pneg %p36
        %p163 = pneg %p33
        %s164 = sand.u32 %s49, 1
        %s165 = scalar_lea.sflag [#allocation6], %s164
        %s166 = sand.u32 %s49, 1
        %s167 = smul.addr %s166, 4
        %s168 = scalar_lea.vmem [#allocation5], %s167
        %p169 = pneg %p62
        %p170 = pneg %p59
        %p171 = pneg %p88
        %p172 = pneg %p85
        %s173 = sand.u32 %s75, 1
        %s174 = scalar_lea.sflag [#allocation4], %s173
        %s175 = sand.u32 %s75, 1
        %s176 = smul.addr %s175, 2
        %s177 = scalar_lea.vmem [#allocation7], %s176
        %v178 = vld [vmem:[%s156] sm:$0xf]
        %v179 = vld [vmem:[#allocation2] sm:$0xff]
        %v180 = vld [vmem:[#allocation2 + $0x8] sm:$0xff]
        %v181 = vld [vmem:[#allocation2 + $0x10] sm:$0xff]
        %v182 = vld [vmem:[#allocation2 + $0x18] sm:$0xff]
        %v183 = vld [vmem:[#allocation2 + $0x20] sm:$0xff]
        %v184 = vld [vmem:[#allocation2 + $0x28] sm:$0xff]
        %v185 = vld [vmem:[#allocation2 + $0x30] sm:$0xff]
        %v186 = vld [vmem:[#allocation2 + $0x38] sm:$0xff]
        %v187 = vld [vmem:[#allocation2 + $0x40] sm:$0xff]
        %v188 = vld [vmem:[#allocation2 + $0x48] sm:$0xff]
        %v189 = vld [vmem:[#allocation2 + $0x50] sm:$0x3]
        %191 = vset.pattern.permute.xlu0 0
        %192 = vperm.xlu0 %191, %v179
        %v193 = vpop.permute.xlu0 %192
        %196 = vset.pattern.permute.xlu0 0
        %197 = vperm.xlu0 %196, %v180
        %v198 = vpop.permute.xlu0 %197
        %201 = vset.pattern.permute.xlu0 0
        %202 = vperm.xlu0 %201, %v181
        %v203 = vpop.permute.xlu0 %202
        %206 = vset.pattern.permute.xlu0 0
        %207 = vperm.xlu0 %206, %v182
        %v208 = vpop.permute.xlu0 %207
        %211 = vset.pattern.permute.xlu0 0
        %212 = vperm.xlu0 %211, %v183
        %v213 = vpop.permute.xlu0 %212
        %v215 = vperm.slane %v178, 0
        %v216 = vmul.f32 %v193, %v215
        %v217 = vmul.f32 %v198, %v215
        %v218 = vmul.f32 %v203, %v215
        %v219 = vmul.f32 %v208, %v215
        %v220 = vmul.f32 %v213, %v215
        %221 = vset.pattern.permute.xlu0 40
        %222 = vperm.xlu0 %221, %v179
        %v223 = vpop.permute.xlu0 %222
        %225 = vset.pattern.permute.xlu0 40
        %226 = vperm.xlu0 %225, %v180
        %v227 = vpop.permute.xlu0 %226
        %229 = vset.pattern.permute.xlu0 40
        %230 = vperm.xlu0 %229, %v181
        %v231 = vpop.permute.xlu0 %230
        %233 = vset.pattern.permute.xlu0 40
        %234 = vperm.xlu0 %233, %v182
        %v235 = vpop.permute.xlu0 %234
        %237 = vset.pattern.permute.xlu0 40
        %238 = vperm.xlu0 %237, %v183
        %v239 = vpop.permute.xlu0 %238
        %v241 = vadd.f32 %v223, %v216
        %v242 = vadd.f32 %v227, %v217
        %v243 = vadd.f32 %v231, %v218
        %v244 = vadd.f32 %v235, %v219
        %v245 = vadd.f32 %v239, %v220
        %246 = vset.pattern.permute.xlu0 1
        %247 = vperm.xlu0 %246, %v179
        %v248 = vpop.permute.xlu0 %247
        %250 = vset.pattern.permute.xlu0 1
        %251 = vperm.xlu0 %250, %v180
        %v252 = vpop.permute.xlu0 %251
        %254 = vset.pattern.permute.xlu0 1
        %255 = vperm.xlu0 %254, %v181
        %v256 = vpop.permute.xlu0 %255
        %258 = vset.pattern.permute.xlu0 1
        %259 = vperm.xlu0 %258, %v182
        %v260 = vpop.permute.xlu0 %259
        %262 = vset.pattern.permute.xlu0 1
        %263 = vperm.xlu0 %262, %v183
        %v264 = vpop.permute.xlu0 %263
        %v266 = vperm.slane %v178, 1
        %v267 = vmul.f32 %v248, %v266
        %v268 = vmul.f32 %v252, %v266
        %v269 = vmul.f32 %v256, %v266
        %v270 = vmul.f32 %v260, %v266
        %v271 = vmul.f32 %v264, %v266
        %v272 = vadd.f32 %v241, %v267
        %v273 = vadd.f32 %v242, %v268
        %v274 = vadd.f32 %v243, %v269
        %v275 = vadd.f32 %v244, %v270
        %v276 = vadd.f32 %v245, %v271
        %277 = vset.pattern.permute.xlu0 2
        %278 = vperm.xlu0 %277, %v179
        %v279 = vpop.permute.xlu0 %278
        %281 = vset.pattern.permute.xlu0 2
        %282 = vperm.xlu0 %281, %v180
        %v283 = vpop.permute.xlu0 %282
        %285 = vset.pattern.permute.xlu0 2
        %286 = vperm.xlu0 %285, %v181
        %v287 = vpop.permute.xlu0 %286
        %289 = vset.pattern.permute.xlu0 2
        %290 = vperm.xlu0 %289, %v182
        %v291 = vpop.permute.xlu0 %290
        %293 = vset.pattern.permute.xlu0 2
        %294 = vperm.xlu0 %293, %v183
        %v295 = vpop.permute.xlu0 %294
        %v297 = vperm.slane %v178, 2
        %v298 = vmul.f32 %v279, %v297
        %v299 = vmul.f32 %v283, %v297
        %v300 = vmul.f32 %v287, %v297
        %v301 = vmul.f32 %v291, %v297
        %v302 = vmul.f32 %v295, %v297
        %v303 = vadd.f32 %v272, %v298
        %v304 = vadd.f32 %v273, %v299
        %v305 = vadd.f32 %v274, %v300
        %v306 = vadd.f32 %v275, %v301
        %v307 = vadd.f32 %v276, %v302
        %308 = vset.pattern.permute.xlu0 3
        %309 = vperm.xlu0 %308, %v179
        %v310 = vpop.permute.xlu0 %309
        %312 = vset.pattern.permute.xlu0 3
        %313 = vperm.xlu0 %312, %v180
        %v314 = vpop.permute.xlu0 %313
        %316 = vset.pattern.permute.xlu0 3
        %317 = vperm.xlu0 %316, %v181
        %v318 = vpop.permute.xlu0 %317
        %320 = vset.pattern.permute.xlu0 3
        %321 = vperm.xlu0 %320, %v182
        %v322 = vpop.permute.xlu0 %321
        %324 = vset.pattern.permute.xlu0 3
        %325 = vperm.xlu0 %324, %v183
        %v326 = vpop.permute.xlu0 %325
        %v328 = vperm.slane %v178, 3
        %v329 = vmul.f32 %v310, %v328
        %v330 = vmul.f32 %v314, %v328
        %v331 = vmul.f32 %v318, %v328
        %v332 = vmul.f32 %v322, %v328
        %v333 = vmul.f32 %v326, %v328
        %v334 = vadd.f32 %v303, %v329
        %v335 = vadd.f32 %v304, %v330
        %v336 = vadd.f32 %v305, %v331
        %v337 = vadd.f32 %v306, %v332
        %v338 = vadd.f32 %v307, %v333
        %v339 = vmax.f32 %v334, 0.0
        %v340 = vmax.f32 %v335, 0.0
        %v341 = vmax.f32 %v336, 0.0
        %v342 = vmax.f32 %v337, 0.0
        %v343 = vmax.f32 %v338, 0.0
        %345 = vset.pattern.permute.xlu0 40
        %346 = vperm.xlu0 %345, %v184
        %v347 = vpop.permute.xlu0 %346
        %350 = vset.pattern.permute.xlu0 40
        %351 = vperm.xlu0 %350, %v185
        %v352 = vpop.permute.xlu0 %351
        %355 = vset.pattern.permute.xlu0 40
        %356 = vperm.xlu0 %355, %v186
        %v357 = vpop.permute.xlu0 %356
        %360 = vset.pattern.permute.xlu0 40
        %361 = vperm.xlu0 %360, %v187
        %v362 = vpop.permute.xlu0 %361
        %365 = vset.pattern.permute.xlu0 40
        %366 = vperm.xlu0 %365, %v188
        %v367 = vpop.permute.xlu0 %366
        %vm369 = vcmask 326656
        %v370 = vsel %vm369, %v184, 0
        %v372 = vsel %vm369, %v185, 0
        %v374 = vsel %vm369, %v186, 0
        %v376 = vsel %vm369, %v187, 0
        %v378 = vsel %vm369, %v188, 0
        %380 = vmatpush.msra.mxu0 0.0
        %381 = vmatpush.msra.mxu0 0.0
        %382 = vmatpush.msra.mxu0 0.0
        %383 = vmatpush.msra.mxu0 0.0
        %384 = vmatpush.msra.mxu0 0.0
        %385 = vmatpush.msra.mxu0 0.0
        %386 = vmatpush.msra.mxu0 0.0
        %387 = vmatpush.msra.mxu0 0.0
        %388 = vmatpush.msra.mxu0 0.0
        %389 = vmatpush.msra.mxu0 0.0
        %390 = vmatpush.msra.mxu0 0.0
        %391 = vmatpush.msra.mxu0 %v343
        %392 = vmatpush.msra.mxu0 %v342
        %393 = vmatpush.msra.mxu0 %v341
        %394 = vmatpush.msra.mxu0 %v340
        %395 = vmatpush.msra.mxu0 %v339
        %396 = vmatmul.f32.gmra.mxu0 %v370
        %v397 = vpop.f32.mrf.mxu0
        %v398 = vadd.f32 %v347, %v397
        %399 = vmatmul.f32.gmra.mxu0 %v372
        %v400 = vpop.f32.mrf.mxu0
        %v401 = vadd.f32 %v352, %v400
        %402 = vmatmul.f32.gmra.mxu0 %v374
        %v403 = vpop.f32.mrf.mxu0
        %v404 = vadd.f32 %v357, %v403
        %405 = vmatmul.f32.gmra.mxu0 %v376
        %v406 = vpop.f32.mrf.mxu0
        %v407 = vadd.f32 %v362, %v406
        %408 = vmatmul.f32.gmra.mxu0 %v378
        %v409 = vpop.f32.mrf.mxu0
        %v410 = vadd.f32 %v367, %v409
        %411 = vdwg.mxu0
        %v412 = vmax.f32 %v398, 0.0
        %v413 = vmax.f32 %v401, 0.0
        %v414 = vmax.f32 %v404, 0.0
        %v415 = vmax.f32 %v407, 0.0
        %v416 = vmax.f32 %v410, 0.0
        %418 = vset.pattern.permute.xlu0 40
        %419 = vperm.xlu0 %418, %v189
        %v420 = vpop.permute.xlu0 %419
        %v422 = vsel %vm369, %v189, 0
        %424 = vmatpush.msra.mxu0 0.0
        %425 = vmatpush.msra.mxu0 0.0
        %426 = vmatpush.msra.mxu0 0.0
        %427 = vmatpush.msra.mxu0 0.0
        %428 = vmatpush.msra.mxu0 0.0
        %429 = vmatpush.msra.mxu0 0.0
        %430 = vmatpush.msra.mxu0 0.0
        %431 = vmatpush.msra.mxu0 0.0
        %432 = vmatpush.msra.mxu0 0.0
        %433 = vmatpush.msra.mxu0 0.0
        %434 = vmatpush.msra.mxu0 0.0
        %435 = vmatpush.msra.mxu0 %v416
        %436 = vmatpush.msra.mxu0 %v415
        %437 = vmatpush.msra.mxu0 %v414
        %438 = vmatpush.msra.mxu0 %v413
        %439 = vmatpush.msra.mxu0 %v412
        %440 = vmatmul.f32.gmra.mxu0 %v422
        %v441 = vpop.f32.mrf.mxu0
        %v442 = vadd.f32 %v420, %v441
        %443 = vdwg.mxu0
        %v445 = vrot.slane %v442, 1
        %v447 = vmax.f32 %v442, %v445
        %v448 = vsub.f32 %v442, %v445
        %v449 = vand.u32 2147483647, %v448
        %v450 = vsub.f32 0.0, %v449
        %v451 = vmul.f32 %v450, 1.442695
        %v452 = vpow.pop %v451
        %v453 = vadd.f32 %v452, 1.0
        %v454 = vlog2.pop %v453
        %v455 = vmul.f32 %v454, 0.6931472
        %v456 = vadd.f32 %v447, %v455
        %v457 = vperm.slane %v456, 0
        %v458 = vsub.f32 %v442, %v457
        %459 = vst [vmem:[%s177] sm:$0x3] %v458
        %s460 = sand.u32 %s75, 1
        %s461 = scalar_lea.sflag [#allocation4], %s460
        %s462 = sand.u32 %s75, 1
        %s463 = smul.addr %s462, 2
        %s464 = scalar_lea.vmem [#allocation7], %s463
        // Predicated region
        $region37: #{actor_net_forward.1} parent=27 // pred_check
          %p465 = pneg %p85
        $region38: #{actor_net_forward.1} parent=27 // pred_check_branch
          %467 = sbr.rel (%p465) target = $region40
        $region39: #{actor_net_forward.1} parent=27 // pred_region
          %469 = vsyncadd %s461, 0
          %s470 = smul.addr %s20, 2
          %s471 = scalar_lea.hbm %s2, %s470
          %s473 = sshll.u32 %s464, 4
          %s474 = int_to_ptr.vmem [resolvable:$true] %s473
          %s475 = sshll.u32 %s471, 4
          %s476 = int_to_ptr.hbm [resolvable:$true] %s475
          %478 = dma.vmem_to_hbm [thread:$0]  %s474, 32, %s476, %s461
        $region40: #{actor_net_forward.1} parent=27 // pred_fallthru
          _
      $region28: #{actor_net_forward.1} parent=5 // pred_fallthru
        _
      %p479 = scmp.le.s32.totalorder 2, %s15
      // Predicated region
      $region41: #{actor_net_forward.1} parent=5 // pred_check
        %p480 = pneg %p479
      $region42: #{actor_net_forward.1} parent=5 // pred_check_branch
        %482 = sbr.rel (%p480) target = $region44
      $region43: #{actor_net_forward.1} parent=5 // pred_region
        %s483 = ssub.s32 %s15, 2
        // Predicated region
        $region45: #{actor_net_forward.1} parent=43 // pred_check
          %p484 = pneg %p91
        $region46: #{actor_net_forward.1} parent=43 // pred_check_branch
          %486 = sbr.rel (%p484) target = $region48
        $region47: #{actor_net_forward.1} parent=43 // pred_region
          %s487 = sand.u32 %s76, 1
          %s488 = scalar_lea.sflag [#allocation4], %s487
          %s489 = sand.u32 %s76, 1
          %s490 = smul.addr %s489, 2
          %s491 = scalar_lea.vmem [#allocation7], %s490
          %493 = dma.done %s488, 32
        $region48: #{actor_net_forward.1} parent=43 // pred_fallthru
          _
      $region44: #{actor_net_forward.1} parent=5 // pred_fallthru
        _
    $region6: #{actor_net_forward.1} parent=1 // loop_footer
      %s19 = sadd.s32 1, %s15
    $region7: #{actor_net_forward.1} parent=1 // loop_footer_branch
      %14 = sbr.rel target = $region3
    $region8: #{actor_net_forward.1} parent=1 // loop_exit
      _
    %494 = vsyncpa [#allocation3], 1
    %s495 = scalar_lea.sflag [#allocation3], 1
    %496 = vsyncpa %s495, 1
    %497 = vsyncpa [#allocation6], 1
    %s498 = scalar_lea.sflag [#allocation6], 1
    %499 = vsyncpa %s498, 1
    %500 = vsyncpa [#allocation4], 1
    %s501 = scalar_lea.sflag [#allocation4], 1
    %502 = vsyncpa %s501, 1

</llo_original>
